<compile_context>
chip_gen: v5e
topology: v5e:2x2
jax: 0.10.0
libtpu: 0.0.40
codegen_flags: <defaults>
</compile_context>

<pallas_src>
import functools
import math

import jax
import jax.numpy as jnp
from jax.experimental import pallas as pl
from jax.experimental.pallas import tpu as pltpu


# ----------------------------- Linear kernel --------------------------------

def _linear_kernel(x_ref, w_ref, b_ref, o_ref, *, mxu_dtype):
    x = x_ref[...]
    w = w_ref[...]
    if mxu_dtype is not None:
        x = x.astype(mxu_dtype)
        w = w.astype(mxu_dtype)
    y = jnp.dot(x, w, preferred_element_type=jnp.float32)
    o_ref[...] = (y + b_ref[...].astype(jnp.float32)).astype(o_ref.dtype)


def linear(x2d, w, b, *, block_rows=128, mxu_dtype=None):
    """x2d: [R, Din], w: [Din, Dout], b: [Dout]  ->  [R, Dout] (x @ w + b)."""
    R, Din = x2d.shape
    Dout = w.shape[1]
    tr = min(block_rows, R)
    # Pad rows so the row tile divides evenly (writes sliced back below).
    r_pad = pl.cdiv(R, tr) * tr
    if r_pad != R:
        x2d = jnp.pad(x2d, ((0, r_pad - R), (0, 0)))

    out = pl.pallas_call(
        functools.partial(_linear_kernel, mxu_dtype=mxu_dtype),
        out_shape=jax.ShapeDtypeStruct((r_pad, Dout), x2d.dtype),
        grid_spec=pltpu.PrefetchScalarGridSpec(
            num_scalar_prefetch=0,
            grid=(r_pad // tr,),
            in_specs=[
                pl.BlockSpec((tr, Din), lambda i: (i, 0)),    # streamed rows
                pl.BlockSpec((Din, Dout), lambda i: (0, 0)),  # resident weight
                pl.BlockSpec((1, Dout), lambda i: (0, 0)),    # resident bias
            ],
            out_specs=pl.BlockSpec((tr, Dout), lambda i: (i, 0)),
        ),
        compiler_params=pltpu.CompilerParams(
            dimension_semantics=("parallel",),
        ),
        cost_estimate=pl.CostEstimate(
            flops=2 * r_pad * Din * Dout,
            bytes_accessed=(r_pad * Din + Din * Dout + Dout + r_pad * Dout) * 4,
            transcendentals=0,
        ),
    )(x2d, w, b.reshape(1, Dout))
    return out[:R] if r_pad != R else out


# ------------------- Flash-style multi-head attention kernel ----------------

def _mha_kernel(q_ref, k_ref, v_ref, o_ref, m_sc, l_sc, acc_sc,
                *, sm_scale, mxu_dtype):
    ki = pl.program_id(2)

    @pl.when(ki == 0)
    def _():
        m_sc[...] = jnp.full_like(m_sc, -jnp.inf)
        l_sc[...] = jnp.zeros_like(l_sc)
        acc_sc[...] = jnp.zeros_like(acc_sc)

    q = q_ref[...]
    k = k_ref[...]
    v = v_ref[...]
    if mxu_dtype is not None:
        q = q.astype(mxu_dtype)
        k = k.astype(mxu_dtype)
        v = v.astype(mxu_dtype)

    # scores = q @ k^T / sqrt(d_k)  (block shapes are [1, tile, d_k])
    s = jnp.einsum("bqd,bkd->bqk", q, k,
                   preferred_element_type=jnp.float32) * sm_scale

    # Online softmax (masked / dropout paths: see TODOs at top of file).
    m_prev = m_sc[...]
    m_new = jnp.maximum(m_prev, s.max(axis=-1, keepdims=True))
    alpha = jnp.exp(m_prev - m_new)
    p = jnp.exp(s - m_new)
    l_sc[...] = alpha * l_sc[...] + p.sum(axis=-1, keepdims=True)
    acc_sc[...] = alpha * acc_sc[...] + jnp.einsum(
        "bqk,bkd->bqd", p.astype(v.dtype), v,
        preferred_element_type=jnp.float32)
    m_sc[...] = m_new

    @pl.when(ki == pl.num_programs(2) - 1)
    def _():
        inv_l = pl.reciprocal(l_sc[...], approx=False)  # EUP slot, exact
        o_ref[...] = (acc_sc[...] * inv_l).astype(o_ref.dtype)


def flash_mha(q, k, v, *, block_q=128, block_k=128, mxu_dtype=None):
    """q: [BH, Sq, d_k], k/v: [BH, Sk, d_k] -> [BH, Sq, d_k] (mask=None, eval)."""
    BH, Sq, Dk = q.shape
    _, Sk, _ = k.shape
    tq = min(block_q, Sq)
    tk = min(block_k, Sk)
    assert Sq % tq == 0 and Sk % tk == 0, "pad seq to tile multiple upstream"
    sm_scale = 1.0 / math.sqrt(Dk)

    return pl.pallas_call(
        functools.partial(_mha_kernel, sm_scale=sm_scale, mxu_dtype=mxu_dtype),
        out_shape=jax.ShapeDtypeStruct((BH, Sq, Dk), q.dtype),
        grid_spec=pltpu.PrefetchScalarGridSpec(
            num_scalar_prefetch=0,
            grid=(BH, Sq // tq, Sk // tk),
            in_specs=[
                pl.BlockSpec((1, tq, Dk), lambda b, qi, ki: (b, qi, 0)),
                pl.BlockSpec((1, tk, Dk), lambda b, qi, ki: (b, ki, 0)),
                pl.BlockSpec((1, tk, Dk), lambda b, qi, ki: (b, ki, 0)),
            ],
            out_specs=pl.BlockSpec((1, tq, Dk), lambda b, qi, ki: (b, qi, 0)),
            scratch_shapes=[
                pltpu.VMEM((1, tq, 1), jnp.float32),    # running max
                pltpu.VMEM((1, tq, 1), jnp.float32),    # running sum
                pltpu.VMEM((1, tq, Dk), jnp.float32),   # accumulator
            ],
        ),
        compiler_params=pltpu.CompilerParams(
            dimension_semantics=("parallel", "parallel", "arbitrary"),
        ),
    )(q, k, v)


# --------------------------- Module-level wrapper ----------------------------

def multi_headed_attention(query, key, value, params, h,
                           *, mask=None, mxu_dtype=None):
    """MultiHeadedAttention.forward (eval mode).  Weights are [in, out]
    (i.e. the transpose of torch nn.Linear's stored [out, in])."""
    assert mask is None  # TODO(synk): mask path not wired into the kernel.
    wq, bq, wk, bk, wv, bv, wo, bo = params
    B, Sq, D = query.shape
    Sk = key.shape[1]
    d_k = D // h

    def project(x, w, b, S):
        y = linear(x.reshape(B * S, D), w, b, mxu_dtype=mxu_dtype)
        # [B*S, D] -> [B, S, h, d_k] -> [B, h, S, d_k] -> [B*h, S, d_k]
        return y.reshape(B, S, h, d_k).transpose(0, 2, 1, 3).reshape(B * h, S, d_k)

    q = project(query, wq, bq, Sq)
    k = project(key, wk, bk, Sk)
    v = project(value, wv, bv, Sk)

    x = flash_mha(q, k, v, mxu_dtype=mxu_dtype)               # [B*h, Sq, d_k]
    # concat heads: [B*h, Sq, d_k] -> [B, Sq, D]
    x = x.reshape(B, h, Sq, d_k).transpose(0, 2, 1, 3).reshape(B * Sq, D)
    out = linear(x, wo, bo, mxu_dtype=mxu_dtype)
    return out.reshape(B, Sq, D)


# ------------------------------- Reference -----------------------------------

def reference(query, key, value, params, h):
    """Pure-JAX replica of the PyTorch forward (mask=None, eval mode)."""
    wq, bq, wk, bk, wv, bv, wo, bo = params
    B, Sq, D = query.shape
    d_k = D // h
    hi = jax.lax.Precision.HIGHEST

    def proj(x, w, b):
        y = jnp.matmul(x, w, precision=hi) + b
        return y.reshape(B, -1, h, d_k).transpose(0, 2, 1, 3)

    q, k, v = proj(query, wq, bq), proj(key, wk, bk), proj(value, wv, bv)
    scores = jnp.einsum("bhqd,bhkd->bhqk", q, k, precision=hi) / math.sqrt(d_k)
    p_attn = jax.nn.softmax(scores, axis=-1)
    x = jnp.einsum("bhqk,bhkd->bhqd", p_attn, v, precision=hi)
    x = x.transpose(0, 2, 1, 3).reshape(B, Sq, D)
    return jnp.matmul(x, wo, precision=hi) + bo


# ---------------------------------- Test --------------------------------------

if __name__ == "__main__":
    B, S, D, H = 2, 8, 32, 4   # batch, seq, d_model, heads  (d_k = 8)

    key = jax.random.PRNGKey(0)
    kx, *kws = jax.random.split(key, 10)

    x = jax.random.normal(kx, (B, S, D), dtype=jnp.float32)

    def make_linear(kw, kb):
        w = jax.random.normal(kw, (D, D), dtype=jnp.float32) * 0.1
        b = jax.random.normal(kb, (D,), dtype=jnp.float32) * 0.1
        return w, b

    wq, bq = make_linear(kws[0], kws[1])
    wk, bk = make_linear(kws[2], kws[3])
    wv, bv = make_linear(kws[4], kws[5])
    wo, bo = make_linear(kws[6], kws[7])
    params = (wq, bq, wk, bk, wv, bv, wo, bo)

    # Self-attention, mask=None, eval-mode dropout (identity).
    out = multi_headed_attention(x, x, x, params, H, mask=None, mxu_dtype=None)
    out = jax.block_until_ready(out)

    ref = reference(x, x, x, params, H)
    assert out.shape == (B, S, D), out.shape
    max_err = float(jnp.max(jnp.abs(out - ref)))
    assert jnp.allclose(out, ref, atol=2e-3, rtol=2e-3), max_err

    print("KERNEL_OK")
</pallas_src>

<mosaic_0001>
module attributes {stable_mosaic.version = 11 : i64} {
  func.func @_linear_kernel(%arg0: i32, %arg1: memref<16x32xf32, #tpu.memory_space<vmem>>, %arg2: memref<32x32xf32, #tpu.memory_space<vmem>>, %arg3: memref<1x32xf32, #tpu.memory_space<vmem>>, %arg4: memref<16x32xf32, #tpu.memory_space<vmem>>) attributes {dimension_semantics = [#tpu.dimension_semantics<parallel>], iteration_bounds = array<i64: 1>, scalar_prefetch = 0 : i64, scratch_operands = 0 : i64, tpu.core_type = #tpu.core_type<tc>, window_params = [{transform_indices = @transform_0, window_bounds = array<i64: 16, 32>}, {pipeline_mode = #tpu.pipeline_mode<synchronous>, transform_indices = @transform_1, window_bounds = array<i64: 32, 32>}, {pipeline_mode = #tpu.pipeline_mode<synchronous>, transform_indices = @transform_2, window_bounds = array<i64: 1, 32>}, {transform_indices = @transform_3, window_bounds = array<i64: 16, 32>}]} {
    %c0 = arith.constant 0 : index
    %c0_0 = arith.constant 0 : index
    %0 = vector.load %arg1[%c0, %c0_0] : memref<16x32xf32, #tpu.memory_space<vmem>>, vector<16x32xf32>
    %c0_1 = arith.constant 0 : index
    %c0_2 = arith.constant 0 : index
    %1 = vector.load %arg2[%c0_1, %c0_2] : memref<32x32xf32, #tpu.memory_space<vmem>>, vector<32x32xf32>
    %cst = arith.constant dense<0.000000e+00> : vector<16x32xf32>
    %2 = tpu.matmul %0, %1, %cst {dimension_numbers = #tpu.dot_dimension_numbers<[1], [0], [0], [1], [0, 0, 1, 1], [], []>} : vector<16x32xf32>, vector<32x32xf32>, vector<16x32xf32> -> vector<16x32xf32>
    %c0_3 = arith.constant 0 : index
    %c0_4 = arith.constant 0 : index
    %3 = vector.load %arg3[%c0_3, %c0_4] : memref<1x32xf32, #tpu.memory_space<vmem>>, vector<1x32xf32>
    %4 = vector.broadcast %3 : vector<1x32xf32> to vector<16x32xf32>
    %5 = arith.addf %2, %4 : vector<16x32xf32>
    %c0_5 = arith.constant 0 : index
    %c0_6 = arith.constant 0 : index
    %6 = vector.load %arg4[%c0_5, %c0_6] : memref<16x32xf32, #tpu.memory_space<vmem>>, vector<16x32xf32>
    tpu.vector_store %arg4[%c0_5, %c0_6], %5 {strides = array<i32>} : memref<16x32xf32, #tpu.memory_space<vmem>>, vector<16x32xf32>,
    return
  }
  func.func @transform_0(%arg0: i32) -> (i32, i32) {
    %c0_i32 = arith.constant 0 : i32
    %c0_i32_0 = arith.constant 0 : i32
    return %arg0, %c0_i32 : i32, i32
  }
  func.func @transform_1(%arg0: i32) -> (i32, i32) {
    %c0_i32 = arith.constant 0 : i32
    %c0_i32_0 = arith.constant 0 : i32
    %c0_i32_1 = arith.constant 0 : i32
    return %c0_i32, %c0_i32_0 : i32, i32
  }
  func.func @transform_2(%arg0: i32) -> (i32, i32) {
    %c0_i32 = arith.constant 0 : i32
    %c0_i32_0 = arith.constant 0 : i32
    %c0_i32_1 = arith.constant 0 : i32
    return %c0_i32, %c0_i32_0 : i32, i32
  }
  func.func @transform_3(%arg0: i32) -> (i32, i32) {
    %c0_i32 = arith.constant 0 : i32
    %c0_i32_0 = arith.constant 0 : i32
    return %arg0, %c0_i32 : i32, i32
  }
}

</mosaic_0001>

<llo_original>
// kernel: tpu_custom_call.1
$region0: #{tpu_custom_call.1}
  #allocation0 [shape = 'u32[]', space=smem, size = 0x4, offset = 0x4, fixed_abs, tag = 'smem constant byte address 0x4 - core index']
  #allocation1 [shape = 'u32[72,128]{1,0:T(1,128)}', space=vmem, size = 0x9000, scoped, tag = 'internal scratch']
  %s0 = inlined_call_operand.hbm [shape: f32[16,32], index: 0, kind: input, shape index: {}]
  %s1 = inlined_call_operand.hbm [shape: f32[32,32], index: 1, kind: input, shape index: {}]
  %s2 = inlined_call_operand.vmem [shape: f32[1,32], index: 2, kind: input, shape index: {}]
  %s3 = inlined_call_operand.hbm [shape: f32[16,32], index: 3, kind: output, shape index: {}]
  %s4 = sld [smem:[#allocation0]]
  $region30: #{tpu_custom_call.1} parent=0
    _
  %s6 = ssub.s32 1, %s4
  %s7 = scalar_select 0, %s6, %s4
  $region1: #{tpu_custom_call.1} parent=0
    #allocation2 [shape = 'u8[8192]{0}', space=vmem, size = 0x2000, scoped, tag = 'input window, operand 0, single buffered']
    #allocation3 [shape = 's32[1]{0}', space=sflag, size = 0x4, scoped, tag = 'scoped memory for tpu_custom_call.1']
    #allocation4 [shape = 's32[1]{0}', space=sflag, size = 0x4, scoped, tag = 'scoped memory for tpu_custom_call.1']
    #allocation5 [shape = 'u8[16384]{0}', space=vmem, size = 0x4000, scoped, tag = 'input window, operand 1, single buffered']
    #allocation6 [shape = 's32[1]{0}', space=sflag, size = 0x4, scoped, tag = 'scoped memory for tpu_custom_call.1']
    #allocation7 [shape = 'u8[8192]{0}', space=vmem, size = 0x2000, scoped, tag = 'output window, operand 0, single buffered']
    %8 = vsyncpa [#allocation3], 0
    %9 = vsyncpa [#allocation6], 0
    %10 = vsyncpa [#allocation4], 0
    // Predicated region
    $region2: #{tpu_custom_call.1} parent=1 // pred_check
      _
    $region3: #{tpu_custom_call.1} parent=1 // pred_check_branch
      %12 = sbr.rel (0) target = $region5
    $region4: #{tpu_custom_call.1} parent=1 // pred_region
      %14 = vsyncadd [#allocation3], 0
      %s15 = sshll.u32 %s0, 4
      %s16 = int_to_ptr.hbm [resolvable:$true] %s15
      %s17 = sshll.u32 [#allocation2], 4
      %s18 = int_to_ptr.vmem [resolvable:$true] %s17
      %23 = dma.hbm_to_vmem [thread:$0]  %s16, 256, %s18, [#allocation3], 128, 128, 8
    $region5: #{tpu_custom_call.1} parent=1 // pred_fallthru
      _
    // Predicated region
    $region6: #{tpu_custom_call.1} parent=1 // pred_check
      _
    $region7: #{tpu_custom_call.1} parent=1 // pred_check_branch
      %25 = sbr.rel (0) target = $region9
    $region8: #{tpu_custom_call.1} parent=1 // pred_region
      %27 = vsyncadd [#allocation6], 0
      %s28 = sshll.u32 %s1, 4
      %s29 = int_to_ptr.hbm [resolvable:$true] %s28
      %s30 = sshll.u32 [#allocation5], 4
      %s31 = int_to_ptr.vmem [resolvable:$true] %s30
      %36 = dma.hbm_to_vmem [thread:$0]  %s29, 512, %s31, [#allocation6], 128, 128, 8
    $region9: #{tpu_custom_call.1} parent=1 // pred_fallthru
      _
    // Predicated region
    $region10: #{tpu_custom_call.1} parent=1 // pred_check
      _
    $region11: #{tpu_custom_call.1} parent=1 // pred_check_branch
      %38 = sbr.rel (0) target = $region13
    $region12: #{tpu_custom_call.1} parent=1 // pred_region
      _
    $region13: #{tpu_custom_call.1} parent=1 // pred_fallthru
      _
    // Predicated region
    $region14: #{tpu_custom_call.1} parent=1 // pred_check
      _
    $region15: #{tpu_custom_call.1} parent=1 // pred_check_branch
      %40 = sbr.rel (0) target = $region17
    $region16: #{tpu_custom_call.1} parent=1 // pred_region
      %42 = dma.done [#allocation3], 256
    $region17: #{tpu_custom_call.1} parent=1 // pred_fallthru
      _
    // Predicated region
    $region18: #{tpu_custom_call.1} parent=1 // pred_check
      _
    $region19: #{tpu_custom_call.1} parent=1 // pred_check_branch
      %44 = sbr.rel (0) target = $region21
    $region20: #{tpu_custom_call.1} parent=1 // pred_region
      %46 = dma.done [#allocation6], 512
    $region21: #{tpu_custom_call.1} parent=1 // pred_fallthru
      _
    %v47 = vld [vmem:[#allocation2] sm:$0xff]
    %v48 = vld [vmem:[#allocation2 + $0x8] sm:$0xff]
    %v49 = vld [vmem:[#allocation5] sm:$0xff]
    %v50 = vld [vmem:[#allocation5 + $0x8] sm:$0xff]
    %v51 = vld [vmem:[#allocation5 + $0x10] sm:$0xff]
    %v52 = vld [vmem:[#allocation5 + $0x18] sm:$0xff]
    %v53 = vld [vmem:[%s2] sm:$0x1]
    %v55 = vperm.slane %v53, 0
    %vm57 = vcmask 261120
    %v59 = vsel %vm57, %v47, 0
    %v62 = vsel %vm57, %v48, 0
    %64 = vmatpush.msra.mxu0 0.0
    %65 = vmatpush.msra.mxu0 0.0
    %66 = vmatpush.msra.mxu0 0.0
    %67 = vmatpush.msra.mxu0 0.0
    %68 = vmatpush.msra.mxu0 0.0
    %69 = vmatpush.msra.mxu0 0.0
    %70 = vmatpush.msra.mxu0 0.0
    %71 = vmatpush.msra.mxu0 0.0
    %72 = vmatpush.msra.mxu0 0.0
    %73 = vmatpush.msra.mxu0 0.0
    %74 = vmatpush.msra.mxu0 0.0
    %75 = vmatpush.msra.mxu0 0.0
    %76 = vmatpush.msra.mxu0 %v52
    %77 = vmatpush.msra.mxu0 %v51
    %78 = vmatpush.msra.mxu0 %v50
    %79 = vmatpush.msra.mxu0 %v49
    %80 = vmatmul.f32.gmra.mxu0 %v59
    %v81 = vpop.f32.mrf.mxu0
    %v82 = vadd.f32 %v55, %v81
    %83 = vmatmul.f32.gmra.mxu0 %v62
    %v84 = vpop.f32.mrf.mxu0
    %v85 = vadd.f32 %v55, %v84
    %86 = vdwg.mxu0
    %87 = vst.msk [vmem:[#allocation7] sm:$0xff] %vm57, %v82
    %88 = vst.msk [vmem:[#allocation7 + $0x8] sm:$0xff] %vm57, %v85
    // Predicated region
    $region22: #{tpu_custom_call.1} parent=1 // pred_check
      _
    $region23: #{tpu_custom_call.1} parent=1 // pred_check_branch
      %90 = sbr.rel (0) target = $region25
    $region24: #{tpu_custom_call.1} parent=1 // pred_region
      %92 = vsyncadd [#allocation4], 0
      %s93 = sshll.u32 [#allocation7], 4
      %s94 = int_to_ptr.vmem [resolvable:$true] %s93
      %s95 = sshll.u32 %s3, 4
      %s96 = int_to_ptr.hbm [resolvable:$true] %s95
      %101 = dma.vmem_to_hbm [thread:$0]  %s94, 256, %s96, [#allocation4], 128, 128, 8
    $region25: #{tpu_custom_call.1} parent=1 // pred_fallthru
      _
    // Predicated region
    $region26: #{tpu_custom_call.1} parent=1 // pred_check
      _
    $region27: #{tpu_custom_call.1} parent=1 // pred_check_branch
      %103 = sbr.rel (0) target = $region29
    $region28: #{tpu_custom_call.1} parent=1 // pred_region
      %105 = dma.done [#allocation4], 256
    $region29: #{tpu_custom_call.1} parent=1 // pred_fallthru
      _
    %106 = vsyncpa [#allocation3], 1
    %107 = vsyncpa [#allocation6], 1
    %108 = vsyncpa [#allocation4], 1

</llo_original>
